<compile_context>
chip_gen: v6e
topology: v6e:2x2x1
jax: 0.10.0
libtpu: 0.0.40
codegen_flags: <defaults>
</compile_context>

<pallas_src>
import functools

import jax
import jax.numpy as jnp
from jax.experimental import pallas as pl
from jax.experimental.pallas import tpu as pltpu


def _round_up(x, n):
    return ((x + n - 1) // n) * n


def _swiglu_mlp_kernel(x_ref, wg_ref, wu_ref, w2_ref, o_ref, acc_ref):
    # x_ref : (tm, dim_pad)       bf16 row tile of the flattened input
    # wg_ref: (dim_pad, tn)       bf16 gate-weight tile   (W1[:ffn].T slice)
    # wu_ref: (dim_pad, tn)       bf16 up-weight tile     (W1[ffn:].T slice)
    # w2_ref: (tn, dim_pad)       bf16 down-weight tile   (W2.T slice)
    # o_ref : (tm, dim_pad)       output tile
    # acc_ref: (tm, dim_pad) f32  accumulator across the ffn (reduction) axis
    j = pl.program_id(1)

    @pl.when(j == 0)
    def _():
        acc_ref[...] = jnp.zeros_like(acc_ref)

    x = x_ref[...]
    a = jnp.dot(x, wg_ref[...], preferred_element_type=jnp.float32)
    b = jnp.dot(x, wu_ref[...], preferred_element_type=jnp.float32)
    # SwiGLU in f32 (sigmoid on the EUP, multiplies on the VPU); one cast to
    # bf16 right before the MXU down-projection.
    g = (a * jax.nn.sigmoid(a)) * b
    acc_ref[...] += jnp.dot(
        g.astype(w2_ref.dtype), w2_ref[...], preferred_element_type=jnp.float32
    )

    @pl.when(j == pl.num_programs(1) - 1)
    def _():
        o_ref[...] = acc_ref[...].astype(o_ref.dtype)


def prepare_weights(w1, w2, compute_dtype=jnp.bfloat16):
    """One-time weight prep, hoisted out of the per-call hot path.

    PyTorch layout in:  w1 (2*ffn_dim, dim), w2 (dim, ffn_dim).
    Returns (in, out)-layout bf16: wg (dim, ffn), wu (dim, ffn), w2t (ffn, dim).
    """
    two_ffn, dim = w1.shape
    ffn = two_ffn // 2
    wg = jnp.asarray(w1[:ffn, :].T, compute_dtype)   # gate half of the chunk
    wu = jnp.asarray(w1[ffn:, :].T, compute_dtype)   # up half of the chunk
    w2t = jnp.asarray(w2.T, compute_dtype)
    return wg, wu, w2t


@functools.partial(jax.jit, static_argnames=("tm", "tn"))
def swiglu_mlp(x, wg, wu, w2t, *, tm=256, tn=512):
    """x: [..., dim]; wg/wu: (dim, ffn) bf16; w2t: (ffn, dim) bf16."""
    orig_shape = x.shape
    dim = orig_shape[-1]
    assert wg.shape[0] == dim and wu.shape == wg.shape and w2t.shape[1] == dim
    ffn = wg.shape[1]
    compute_dtype = wg.dtype
    out_dtype = x.dtype

    x2d = x.reshape(-1, dim).astype(compute_dtype)
    m = x2d.shape[0]

    # Tile sizes / padded extents (lane dims multiple of 128, sublanes of 8).
    tm_eff = min(tm, _round_up(m, 8))
    m_pad = _round_up(m, tm_eff)
    dim_pad = _round_up(dim, 128)
    tn_eff = min(tn, _round_up(ffn, 128))
    ffn_pad = _round_up(ffn, tn_eff)

    if (m_pad, dim_pad) != (m, dim):
        x2d = jnp.pad(x2d, ((0, m_pad - m), (0, dim_pad - dim)))
    if (dim_pad, ffn_pad) != (dim, ffn):
        wg = jnp.pad(wg, ((0, dim_pad - dim), (0, ffn_pad - ffn)))
        wu = jnp.pad(wu, ((0, dim_pad - dim), (0, ffn_pad - ffn)))
        w2t = jnp.pad(w2t, ((0, ffn_pad - ffn), (0, dim_pad - dim)))

    grid = (m_pad // tm_eff, ffn_pad // tn_eff)

    itemsize = jnp.dtype(compute_dtype).itemsize
    cost = pl.CostEstimate(
        flops=6 * m * dim * ffn,
        transcendentals=m * ffn,
        bytes_accessed=int(
            (x2d.size + wg.size + wu.size + w2t.size) * itemsize
            + m_pad * dim_pad * jnp.dtype(out_dtype).itemsize
        ),
    )

    out = pl.pallas_call(
        _swiglu_mlp_kernel,
        out_shape=jax.ShapeDtypeStruct((m_pad, dim_pad), out_dtype),
        grid_spec=pltpu.PrefetchScalarGridSpec(
            num_scalar_prefetch=0,
            grid=grid,
            in_specs=[
                pl.BlockSpec((tm_eff, dim_pad), lambda i, j: (i, 0)),   # x rows
                pl.BlockSpec((dim_pad, tn_eff), lambda i, j: (0, j)),   # gate W
                pl.BlockSpec((dim_pad, tn_eff), lambda i, j: (0, j)),   # up W
                pl.BlockSpec((tn_eff, dim_pad), lambda i, j: (j, 0)),   # down W
            ],
            out_specs=pl.BlockSpec((tm_eff, dim_pad), lambda i, j: (i, 0)),
            scratch_shapes=[pltpu.VMEM((tm_eff, dim_pad), jnp.float32)],
        ),
        compiler_params=pltpu.CompilerParams(
            dimension_semantics=("parallel", "arbitrary"),
            vmem_limit_bytes=64 * 1024 * 1024,
        ),
        cost_estimate=cost,
    )(x2d, wg, wu, w2t)

    return out[:m, :dim].reshape(orig_shape)


def _reference(x, w1, w2):
    h = x @ w1.T
    ffn = w1.shape[0] // 2
    a, b = h[..., :ffn], h[..., ffn:]
    g = jax.nn.silu(a) * b
    return g @ w2.T


if __name__ == "__main__":
    # Small shapes consistent with the module: batch=2, seq=8, dim=32, ffn_dim=128.
    batch, seq, dim, ffn_dim = 2, 8, 32, 128

    key = jax.random.PRNGKey(0)
    kx, k1, k2 = jax.random.split(key, 3)

    x = jax.random.normal(kx, (batch, seq, dim), dtype=jnp.float32)
    # Deterministic nn.Linear-style fan-in-scaled parameters (PyTorch layout).
    w1 = jax.random.uniform(k1, (2 * ffn_dim, dim), jnp.float32, -1.0, 1.0) / jnp.sqrt(dim)
    w2 = jax.random.uniform(k2, (dim, ffn_dim), jnp.float32, -1.0, 1.0) / jnp.sqrt(ffn_dim)

    # Weight prep happens ONCE (outside the hot path).
    wg, wu, w2t = prepare_weights(w1, w2)

    out = swiglu_mlp(x, wg, wu, w2t)
    out = jax.block_until_ready(out)

    ref = _reference(x, w1, w2)
    assert out.shape == (batch, seq, dim)
    # bf16 MXU inputs with f32 accumulation -> ~1e-2 level agreement vs f32 ref.
    assert jnp.allclose(out, ref, atol=2e-2, rtol=2e-2), "mismatch vs reference"

    print("KERNEL_OK")
</pallas_src>

<mosaic_0001>
module attributes {stable_mosaic.version = 11 : i64} {
  func.func @_swiglu_mlp_kernel(%arg0: i32, %arg1: i32, %arg2: memref<16x128xbf16, #tpu.memory_space<vmem>>, %arg3: memref<128x128xbf16, #tpu.memory_space<vmem>>, %arg4: memref<128x128xbf16, #tpu.memory_space<vmem>>, %arg5: memref<128x128xbf16, #tpu.memory_space<vmem>>, %arg6: memref<16x128xf32, #tpu.memory_space<vmem>>, %arg7: memref<16x128xf32, #tpu.memory_space<vmem>>) attributes {dimension_semantics = [#tpu.dimension_semantics<parallel>, #tpu.dimension_semantics<arbitrary>], iteration_bounds = array<i64: 1, 1>, scalar_prefetch = 0 : i64, scratch_operands = 1 : i64, tpu.core_type = #tpu.core_type<tc>, window_params = [{transform_indices = @transform_0, window_bounds = array<i64: 16, 128>}, {transform_indices = @transform_1, window_bounds = array<i64: 128, 128>}, {transform_indices = @transform_2, window_bounds = array<i64: 128, 128>}, {transform_indices = @transform_3, window_bounds = array<i64: 128, 128>}, {transform_indices = @transform_4, window_bounds = array<i64: 16, 128>}]} {
    %c0_i32 = arith.constant 0 : i32
    %0 = arith.cmpi eq, %arg1, %c0_i32 : i32
    %1 = arith.extui %0 : i1 to i32
    %c0_i32_0 = arith.constant 0 : i32
    %2 = arith.cmpi ne, %1, %c0_i32_0 : i32
    scf.if %2 {
      %cst_17 = arith.constant 0.000000e+00 : f32
      %24 = vector.broadcast %cst_17 : f32 to vector<16x128xf32>
      %c0_18 = arith.constant 0 : index
      %c0_19 = arith.constant 0 : index
      %25 = vector.load %arg7[%c0_18, %c0_19] : memref<16x128xf32, #tpu.memory_space<vmem>>, vector<16x128xf32>
      tpu.vector_store %arg7[%c0_18, %c0_19], %24 {strides = array<i32>} : memref<16x128xf32, #tpu.memory_space<vmem>>, vector<16x128xf32>,
    } else {
    }
    %c0 = arith.constant 0 : index
    %c0_1 = arith.constant 0 : index
    %3 = vector.load %arg2[%c0, %c0_1] : memref<16x128xbf16, #tpu.memory_space<vmem>>, vector<16x128xbf16>
    %c0_2 = arith.constant 0 : index
    %c0_3 = arith.constant 0 : index
    %4 = vector.load %arg3[%c0_2, %c0_3] : memref<128x128xbf16, #tpu.memory_space<vmem>>, vector<128x128xbf16>
    %cst = arith.constant dense<0.000000e+00> : vector<16x128xf32>
    %5 = tpu.matmul %3, %4, %cst {dimension_numbers = #tpu.dot_dimension_numbers<[1], [0], [0], [1], [0, 0, 1, 1], [], []>} : vector<16x128xbf16>, vector<128x128xbf16>, vector<16x128xf32> -> vector<16x128xf32>
    %c0_4 = arith.constant 0 : index
    %c0_5 = arith.constant 0 : index
    %6 = vector.load %arg4[%c0_4, %c0_5] : memref<128x128xbf16, #tpu.memory_space<vmem>>, vector<128x128xbf16>
    %cst_6 = arith.constant dense<0.000000e+00> : vector<16x128xf32>
    %7 = tpu.matmul %3, %6, %cst_6 {dimension_numbers = #tpu.dot_dimension_numbers<[1], [0], [0], [1], [0, 0, 1, 1], [], []>} : vector<16x128xbf16>, vector<128x128xbf16>, vector<16x128xf32> -> vector<16x128xf32>
    %8 = arith.negf %5 : vector<16x128xf32>
    %9 = math.exp %8 : vector<16x128xf32>
    %cst_7 = arith.constant 1.000000e+00 : f32
    %10 = vector.broadcast %cst_7 : f32 to vector<16x128xf32>
    %11 = arith.addf %10, %9 : vector<16x128xf32>
    %12 = arith.divf %10, %11 : vector<16x128xf32>
    %13 = arith.mulf %5, %12 : vector<16x128xf32>
    %14 = arith.mulf %13, %7 : vector<16x128xf32>
    %c0_8 = arith.constant 0 : index
    %c0_9 = arith.constant 0 : index
    %15 = vector.load %arg7[%c0_8, %c0_9] : memref<16x128xf32, #tpu.memory_space<vmem>>, vector<16x128xf32>
    %16 = arith.truncf %14 : vector<16x128xf32> to vector<16x128xbf16>
    %c0_10 = arith.constant 0 : index
    %c0_11 = arith.constant 0 : index
    %17 = vector.load %arg5[%c0_10, %c0_11] : memref<128x128xbf16, #tpu.memory_space<vmem>>, vector<128x128xbf16>
    %cst_12 = arith.constant dense<0.000000e+00> : vector<16x128xf32>
    %18 = tpu.matmul %16, %17, %cst_12 {dimension_numbers = #tpu.dot_dimension_numbers<[1], [0], [0], [1], [0, 0, 1, 1], [], []>} : vector<16x128xbf16>, vector<128x128xbf16>, vector<16x128xf32> -> vector<16x128xf32>
    %19 = arith.addf %15, %18 : vector<16x128xf32>
    %c0_13 = arith.constant 0 : index
    %c0_14 = arith.constant 0 : index
    %20 = vector.load %arg7[%c0_13, %c0_14] : memref<16x128xf32, #tpu.memory_space<vmem>>, vector<16x128xf32>
    tpu.vector_store %arg7[%c0_13, %c0_14], %19 {strides = array<i32>} : memref<16x128xf32, #tpu.memory_space<vmem>>, vector<16x128xf32>,
    %c0_i32_15 = arith.constant 0 : i32
    %21 = arith.cmpi eq, %arg1, %c0_i32_15 : i32
    %22 = arith.extui %21 : i1 to i32
    %c0_i32_16 = arith.constant 0 : i32
    %23 = arith.cmpi ne, %22, %c0_i32_16 : i32
    scf.if %23 {
      %c0_17 = arith.constant 0 : index
      %c0_18 = arith.constant 0 : index
      %24 = vector.load %arg7[%c0_17, %c0_18] : memref<16x128xf32, #tpu.memory_space<vmem>>, vector<16x128xf32>
      %c0_19 = arith.constant 0 : index
      %c0_20 = arith.constant 0 : index
      %25 = vector.load %arg6[%c0_19, %c0_20] : memref<16x128xf32, #tpu.memory_space<vmem>>, vector<16x128xf32>
      tpu.vector_store %arg6[%c0_19, %c0_20], %24 {strides = array<i32>} : memref<16x128xf32, #tpu.memory_space<vmem>>, vector<16x128xf32>,
    } else {
    }
    return
  }
  func.func @transform_0(%arg0: i32, %arg1: i32) -> (i32, i32) {
    %c0_i32 = arith.constant 0 : i32
    %c0_i32_0 = arith.constant 0 : i32
    return %arg0, %c0_i32 : i32, i32
  }
  func.func @transform_1(%arg0: i32, %arg1: i32) -> (i32, i32) {
    %c0_i32 = arith.constant 0 : i32
    %c0_i32_0 = arith.constant 0 : i32
    return %c0_i32, %arg1 : i32, i32
  }
  func.func @transform_2(%arg0: i32, %arg1: i32) -> (i32, i32) {
    %c0_i32 = arith.constant 0 : i32
    %c0_i32_0 = arith.constant 0 : i32
    return %c0_i32, %arg1 : i32, i32
  }
  func.func @transform_3(%arg0: i32, %arg1: i32) -> (i32, i32) {
    %c0_i32 = arith.constant 0 : i32
    %c0_i32_0 = arith.constant 0 : i32
    return %arg1, %c0_i32 : i32, i32
  }
  func.func @transform_4(%arg0: i32, %arg1: i32) -> (i32, i32) {
    %c0_i32 = arith.constant 0 : i32
    %c0_i32_0 = arith.constant 0 : i32
    return %arg0, %c0_i32 : i32, i32
  }
}

</mosaic_0001>

<llo_original>
// kernel: swiglu_mlp.1
$region0: #{swiglu_mlp.1}
  #allocation0 [shape = 'u32[]', space=smem, size = 0x4, offset = 0x4, fixed_abs, tag = 'smem constant byte address 0x4 - core index']
  #allocation1 [shape = 'u32[144,128]{1,0:T(1,128)}', space=vmem, size = 0x12000, scoped, tag = 'internal scratch']
  #allocation2 [shape = 'f32[16,128]{1,0:T(8,128)}', space=vmem, size = 0x2000, scoped, tag = 'scratch operand']
  %s0 = inlined_call_operand.vmem [shape: bf16[16,128], index: 0, kind: input, shape index: {}]
  %s1 = inlined_call_operand.vmem [shape: bf16[128,128], index: 1, kind: input, shape index: {}]
  %s2 = inlined_call_operand.vmem [shape: bf16[128,128], index: 2, kind: input, shape index: {}]
  %s3 = inlined_call_operand.vmem [shape: bf16[128,128], index: 3, kind: input, shape index: {}]
  %s4 = inlined_call_operand.vmem [shape: f32[16,128], index: 4, kind: output, shape index: {}]
  %s5 = sld [smem:[#allocation0]]
  $region34: #{swiglu_mlp.1} parent=0
    _
  %s7 = ssub.s32 1, %s5
  %s8 = scalar_select 0, %s7, %s5
  // Predicated region
  $region2: #{swiglu_mlp.1} parent=0 // pred_check
    _
  $region3: #{swiglu_mlp.1} parent=0 // pred_check_branch
    %10 = sbr.rel (0) target = $region5
  $region4: #{swiglu_mlp.1} parent=0 // pred_region
    _
  $region5: #{swiglu_mlp.1} parent=0 // pred_fallthru
    _
  // Predicated region
  $region6: #{swiglu_mlp.1} parent=0 // pred_check
    _
  $region7: #{swiglu_mlp.1} parent=0 // pred_check_branch
    %12 = sbr.rel (0) target = $region9
  $region8: #{swiglu_mlp.1} parent=0 // pred_region
    _
  $region9: #{swiglu_mlp.1} parent=0 // pred_fallthru
    _
  // Predicated region
  $region10: #{swiglu_mlp.1} parent=0 // pred_check
    _
  $region11: #{swiglu_mlp.1} parent=0 // pred_check_branch
    %14 = sbr.rel (0) target = $region13
  $region12: #{swiglu_mlp.1} parent=0 // pred_region
    _
  $region13: #{swiglu_mlp.1} parent=0 // pred_fallthru
    _
  // Predicated region
  $region14: #{swiglu_mlp.1} parent=0 // pred_check
    _
  $region15: #{swiglu_mlp.1} parent=0 // pred_check_branch
    %16 = sbr.rel (0) target = $region17
  $region16: #{swiglu_mlp.1} parent=0 // pred_region
    _
  $region17: #{swiglu_mlp.1} parent=0 // pred_fallthru
    _
  %p18 = scmp.eq.s32.totalorder 0, 0
  // Predicated region
  $region18: #{swiglu_mlp.1} parent=0 // pred_check
    %p19 = pneg %p18
  $region19: #{swiglu_mlp.1} parent=0 // pred_check_branch
    %21 = sbr.rel (%p19) target = $region21
  $region20: #{swiglu_mlp.1} parent=0 // pred_region
    %22 = vst [vmem:[#allocation2] sm:$0xff] 0.0
    %23 = vst [vmem:[#allocation2 + $0x8] sm:$0xff] 0.0
  $region21: #{swiglu_mlp.1} parent=0 // pred_fallthru
    _
  %v24 = vld [vmem:[%s0] sm:$0xf]
  %v25 = vld [vmem:[%s0 + $0x4] sm:$0xf]
  %v26 = vld [vmem:[%s1] sm:$0xf]
  %v27 = vld [vmem:[%s1 + $0x4] sm:$0xf]
  %v28 = vld [vmem:[%s1 + $0x8] sm:$0xf]
  %v29 = vld [vmem:[%s1 + $0xc] sm:$0xf]
  %v30 = vld [vmem:[%s1 + $0x10] sm:$0xf]
  %v31 = vld [vmem:[%s1 + $0x14] sm:$0xf]
  %v32 = vld [vmem:[%s1 + $0x18] sm:$0xf]
  %v33 = vld [vmem:[%s1 + $0x1c] sm:$0xf]
  %v34 = vld [vmem:[%s1 + $0x20] sm:$0xf]
  %v35 = vld [vmem:[%s1 + $0x24] sm:$0xf]
  %v36 = vld [vmem:[%s1 + $0x28] sm:$0xf]
  %v37 = vld [vmem:[%s1 + $0x2c] sm:$0xf]
  %v38 = vld [vmem:[%s1 + $0x30] sm:$0xf]
  %v39 = vld [vmem:[%s1 + $0x34] sm:$0xf]
  %v40 = vld [vmem:[%s1 + $0x38] sm:$0xf]
  %v41 = vld [vmem:[%s1 + $0x3c] sm:$0xf]
  %v44 = vunpack.c.l.b16 %v24
  %v45 = vunpack.c.l.b16 %v25
  %v46 = vpack.c.b16 %v45, %v44
  %v64 = vunpack.c.l.b16 %v26
  %v65 = vunpack.c.l.b16 %v27
  %v66 = vunpack.c.l.b16 %v28
  %v67 = vunpack.c.l.b16 %v29
  %v68 = vunpack.c.l.b16 %v30
  %v69 = vunpack.c.l.b16 %v31
  %v70 = vunpack.c.l.b16 %v32
  %v71 = vunpack.c.l.b16 %v33
  %v72 = vunpack.c.l.b16 %v34
  %v73 = vunpack.c.l.b16 %v35
  %v74 = vunpack.c.l.b16 %v36
  %v75 = vunpack.c.l.b16 %v37
  %v76 = vunpack.c.l.b16 %v38
  %v77 = vunpack.c.l.b16 %v39
  %v78 = vunpack.c.l.b16 %v40
  %v79 = vunpack.c.l.b16 %v41
  %v80 = vpack.c.b16 %v65, %v64
  %v81 = vpack.c.b16 %v67, %v66
  %v82 = vpack.c.b16 %v69, %v68
  %v83 = vpack.c.b16 %v71, %v70
  %v84 = vpack.c.b16 %v73, %v72
  %v85 = vpack.c.b16 %v75, %v74
  %v86 = vpack.c.b16 %v77, %v76
  %v87 = vpack.c.b16 %v79, %v78
  %96 = vmatprep.subr.bf16.mxu0 0
  %97 = vmatpush1.bf16.msra.mxu0 %v87
  %98 = vmatprep.subr.bf16.mxu0 0
  %99 = vmatpush1.bf16.msra.mxu0 %v86
  %100 = vmatprep.subr.bf16.mxu0 0
  %101 = vmatpush1.bf16.msra.mxu0 %v85
  %102 = vmatprep.subr.bf16.mxu0 0
  %103 = vmatpush1.bf16.msra.mxu0 %v84
  %104 = vmatprep.subr.bf16.mxu0 0
  %105 = vmatpush1.bf16.msra.mxu0 %v83
  %106 = vmatprep.subr.bf16.mxu0 0
  %107 = vmatpush1.bf16.msra.mxu0 %v82
  %108 = vmatprep.subr.bf16.mxu0 0
  %109 = vmatpush1.bf16.msra.mxu0 %v81
  %110 = vmatprep.subr.bf16.mxu0 0
  %111 = vmatpush1.bf16.msra.mxu0 %v80
  %112 = vmatprep.subr.bf16.mxu0 0
  %113 = vmatpush2.bf16.msra.mxu0 0
  %114 = vmatprep.subr.bf16.mxu0 0
  %115 = vmatpush2.bf16.msra.mxu0 0
  %116 = vmatprep.subr.bf16.mxu0 0
  %117 = vmatpush2.bf16.msra.mxu0 0
  %118 = vmatprep.subr.bf16.mxu0 0
  %119 = vmatpush2.bf16.msra.mxu0 0
  %120 = vmatprep.subr.bf16.mxu0 0
  %121 = vmatpush2.bf16.msra.mxu0 0
  %122 = vmatprep.subr.bf16.mxu0 0
  %123 = vmatpush2.bf16.msra.mxu0 0
  %124 = vmatprep.subr.bf16.mxu0 0
  %125 = vmatpush2.bf16.msra.mxu0 0
  %126 = vmatprep.subr.bf16.mxu0 0
  %127 = vmatpush2.bf16.msra.mxu0 0
  %128 = vmatprep.mubr.bf16.mxu0 0
  %129 = vmatmul.mubr.bf16.gmra.mxu0 %v46
  %v130 = vpop.f32.mrf.mxu0
  %v131 = vadd.f32 0.0, %v130
  %v132 = vpop.f32.mrf.mxu0
  %v133 = vpop.f32.mrf.mxu0
  %v134 = vadd.f32 0.0, %v133
  %v135 = vpop.f32.mrf.mxu0
  %136 = vdwg.mxu0
  %v137 = vld [vmem:[%s2] sm:$0xf]
  %v138 = vld [vmem:[%s2 + $0x4] sm:$0xf]
  %v139 = vld [vmem:[%s2 + $0x8] sm:$0xf]
  %v140 = vld [vmem:[%s2 + $0xc] sm:$0xf]
  %v141 = vld [vmem:[%s2 + $0x10] sm:$0xf]
  %v142 = vld [vmem:[%s2 + $0x14] sm:$0xf]
  %v143 = vld [vmem:[%s2 + $0x18] sm:$0xf]
  %v144 = vld [vmem:[%s2 + $0x1c] sm:$0xf]
  %v145 = vld [vmem:[%s2 + $0x20] sm:$0xf]
  %v146 = vld [vmem:[%s2 + $0x24] sm:$0xf]
  %v147 = vld [vmem:[%s2 + $0x28] sm:$0xf]
  %v148 = vld [vmem:[%s2 + $0x2c] sm:$0xf]
  %v149 = vld [vmem:[%s2 + $0x30] sm:$0xf]
  %v150 = vld [vmem:[%s2 + $0x34] sm:$0xf]
  %v151 = vld [vmem:[%s2 + $0x38] sm:$0xf]
  %v152 = vld [vmem:[%s2 + $0x3c] sm:$0xf]
  %v169 = vunpack.c.l.b16 %v137
  %v170 = vunpack.c.l.b16 %v138
  %v171 = vunpack.c.l.b16 %v139
  %v172 = vunpack.c.l.b16 %v140
  %v173 = vunpack.c.l.b16 %v141
  %v174 = vunpack.c.l.b16 %v142
  %v175 = vunpack.c.l.b16 %v143
  %v176 = vunpack.c.l.b16 %v144
  %v177 = vunpack.c.l.b16 %v145
  %v178 = vunpack.c.l.b16 %v146
  %v179 = vunpack.c.l.b16 %v147
  %v180 = vunpack.c.l.b16 %v148
  %v181 = vunpack.c.l.b16 %v149
  %v182 = vunpack.c.l.b16 %v150
  %v183 = vunpack.c.l.b16 %v151
  %v184 = vunpack.c.l.b16 %v152
  %v185 = vpack.c.b16 %v170, %v169
  %v186 = vpack.c.b16 %v172, %v171
  %v187 = vpack.c.b16 %v174, %v173
  %v188 = vpack.c.b16 %v176, %v175
  %v189 = vpack.c.b16 %v178, %v177
  %v190 = vpack.c.b16 %v180, %v179
  %v191 = vpack.c.b16 %v182, %v181
  %v192 = vpack.c.b16 %v184, %v183
  %201 = vmatprep.subr.bf16.mxu0 0
  %202 = vmatpush1.bf16.msra.mxu0 %v192
  %203 = vmatprep.subr.bf16.mxu0 0
  %204 = vmatpush1.bf16.msra.mxu0 %v191
  %205 = vmatprep.subr.bf16.mxu0 0
  %206 = vmatpush1.bf16.msra.mxu0 %v190
  %207 = vmatprep.subr.bf16.mxu0 0
  %208 = vmatpush1.bf16.msra.mxu0 %v189
  %209 = vmatprep.subr.bf16.mxu0 0
  %210 = vmatpush1.bf16.msra.mxu0 %v188
  %211 = vmatprep.subr.bf16.mxu0 0
  %212 = vmatpush1.bf16.msra.mxu0 %v187
  %213 = vmatprep.subr.bf16.mxu0 0
  %214 = vmatpush1.bf16.msra.mxu0 %v186
  %215 = vmatprep.subr.bf16.mxu0 0
  %216 = vmatpush1.bf16.msra.mxu0 %v185
  %217 = vmatprep.subr.bf16.mxu0 0
  %218 = vmatpush2.bf16.msra.mxu0 0
  %219 = vmatprep.subr.bf16.mxu0 0
  %220 = vmatpush2.bf16.msra.mxu0 0
  %221 = vmatprep.subr.bf16.mxu0 0
  %222 = vmatpush2.bf16.msra.mxu0 0
  %223 = vmatprep.subr.bf16.mxu0 0
  %224 = vmatpush2.bf16.msra.mxu0 0
  %225 = vmatprep.subr.bf16.mxu0 0
  %226 = vmatpush2.bf16.msra.mxu0 0
  %227 = vmatprep.subr.bf16.mxu0 0
  %228 = vmatpush2.bf16.msra.mxu0 0
  %229 = vmatprep.subr.bf16.mxu0 0
  %230 = vmatpush2.bf16.msra.mxu0 0
  %231 = vmatprep.subr.bf16.mxu0 0
  %232 = vmatpush2.bf16.msra.mxu0 0
  %233 = vmatprep.mubr.bf16.mxu0 0
  %234 = vmatmul.mubr.bf16.gmra.mxu0 %v46
  %v235 = vpop.f32.mrf.mxu0
  %v236 = vadd.f32 0.0, %v235
  %v237 = vpop.f32.mrf.mxu0
  %v238 = vpop.f32.mrf.mxu0
  %v239 = vadd.f32 0.0, %v238
  %v240 = vpop.f32.mrf.mxu0
  %241 = vdwg.mxu0
  %v242 = vxor.u32 %v131, 2147483648
  %v243 = vxor.u32 %v134, 2147483648
  %v244 = vmul.f32 %v242, 1.442695
  %v245 = vpow.pop %v244
  %v246 = vmul.f32 %v243, 1.442695
  %v247 = vpow.pop %v246
  %v248 = vadd.f32 %v245, 1.0
  %v249 = vadd.f32 %v247, 1.0
  %v250 = vrcp.pop %v248
  %v251 = vmul.f32 1.0, %v250
  %v252 = vrcp.pop %v249
  %v253 = vmul.f32 1.0, %v252
  %v254 = vmul.f32 %v131, %v251
  %v255 = vmul.f32 %v134, %v253
  %v256 = vmul.f32 %v254, %v236
  %v257 = vmul.f32 %v255, %v239
  %v258 = vld [vmem:[#allocation2] sm:$0xff]
  %v259 = vld [vmem:[#allocation2 + $0x8] sm:$0xff]
  %v260 = vpack.c.bf16 %v257, %v256
  %v261 = vld [vmem:[%s3] sm:$0xf]
  %v262 = vld [vmem:[%s3 + $0x4] sm:$0xf]
  %v263 = vld [vmem:[%s3 + $0x8] sm:$0xf]
  %v264 = vld [vmem:[%s3 + $0xc] sm:$0xf]
  %v265 = vld [vmem:[%s3 + $0x10] sm:$0xf]
  %v266 = vld [vmem:[%s3 + $0x14] sm:$0xf]
  %v267 = vld [vmem:[%s3 + $0x18] sm:$0xf]
  %v268 = vld [vmem:[%s3 + $0x1c] sm:$0xf]
  %v269 = vld [vmem:[%s3 + $0x20] sm:$0xf]
  %v270 = vld [vmem:[%s3 + $0x24] sm:$0xf]
  %v271 = vld [vmem:[%s3 + $0x28] sm:$0xf]
  %v272 = vld [vmem:[%s3 + $0x2c] sm:$0xf]
  %v273 = vld [vmem:[%s3 + $0x30] sm:$0xf]
  %v274 = vld [vmem:[%s3 + $0x34] sm:$0xf]
  %v275 = vld [vmem:[%s3 + $0x38] sm:$0xf]
  %v276 = vld [vmem:[%s3 + $0x3c] sm:$0xf]
  %v293 = vunpack.c.l.b16 %v261
  %v294 = vunpack.c.l.b16 %v262
  %v295 = vunpack.c.l.b16 %v263
  %v296 = vunpack.c.l.b16 %v264
  %v297 = vunpack.c.l.b16 %v265
  %v298 = vunpack.c.l.b16 %v266
  %v299 = vunpack.c.l.b16 %v267
  %v300 = vunpack.c.l.b16 %v268
  %v301 = vunpack.c.l.b16 %v269
  %v302 = vunpack.c.l.b16 %v270
  %v303 = vunpack.c.l.b16 %v271
  %v304 = vunpack.c.l.b16 %v272
  %v305 = vunpack.c.l.b16 %v273
  %v306 = vunpack.c.l.b16 %v274
  %v307 = vunpack.c.l.b16 %v275
  %v308 = vunpack.c.l.b16 %v276
  %v309 = vpack.c.b16 %v294, %v293
  %v310 = vpack.c.b16 %v296, %v295
  %v311 = vpack.c.b16 %v298, %v297
  %v312 = vpack.c.b16 %v300, %v299
  %v313 = vpack.c.b16 %v302, %v301
  %v314 = vpack.c.b16 %v304, %v303
  %v315 = vpack.c.b16 %v306, %v305
  %v316 = vpack.c.b16 %v308, %v307
  %325 = vmatprep.subr.bf16.mxu0 0
  %326 = vmatpush1.bf16.msra.mxu0 %v316
  %327 = vmatprep.subr.bf16.mxu0 0
  %328 = vmatpush1.bf16.msra.mxu0 %v315
  %329 = vmatprep.subr.bf16.mxu0 0
  %330 = vmatpush1.bf16.msra.mxu0 %v314
  %331 = vmatprep.subr.bf16.mxu0 0
  %332 = vmatpush1.bf16.msra.mxu0 %v313
  %333 = vmatprep.subr.bf16.mxu0 0
  %334 = vmatpush1.bf16.msra.mxu0 %v312
  %335 = vmatprep.subr.bf16.mxu0 0
  %336 = vmatpush1.bf16.msra.mxu0 %v311
  %337 = vmatprep.subr.bf16.mxu0 0
  %338 = vmatpush1.bf16.msra.mxu0 %v310
  %339 = vmatprep.subr.bf16.mxu0 0
  %340 = vmatpush1.bf16.msra.mxu0 %v309
  %341 = vmatprep.subr.bf16.mxu0 0
  %342 = vmatpush2.bf16.msra.mxu0 0
  %343 = vmatprep.subr.bf16.mxu0 0
  %344 = vmatpush2.bf16.msra.mxu0 0
  %345 = vmatprep.subr.bf16.mxu0 0
  %346 = vmatpush2.bf16.msra.mxu0 0
  %347 = vmatprep.subr.bf16.mxu0 0
  %348 = vmatpush2.bf16.msra.mxu0 0
  %349 = vmatprep.subr.bf16.mxu0 0
  %350 = vmatpush2.bf16.msra.mxu0 0
  %351 = vmatprep.subr.bf16.mxu0 0
  %352 = vmatpush2.bf16.msra.mxu0 0
  %353 = vmatprep.subr.bf16.mxu0 0
  %354 = vmatpush2.bf16.msra.mxu0 0
  %355 = vmatprep.subr.bf16.mxu0 0
  %356 = vmatpush2.bf16.msra.mxu0 0
  %357 = vmatprep.mubr.bf16.mxu0 0
  %358 = vmatmul.mubr.bf16.gmra.mxu0 %v260
  %v359 = vpop.f32.mrf.mxu0
  %v360 = vadd.f32 0.0, %v359
  %v361 = vpop.f32.mrf.mxu0
  %v362 = vpop.f32.mrf.mxu0
  %v363 = vadd.f32 0.0, %v362
  %v364 = vpop.f32.mrf.mxu0
  %365 = vdwg.mxu0
  %v366 = vadd.f32 %v258, %v360
  %v367 = vadd.f32 %v259, %v363
  %368 = vst [vmem:[#allocation2] sm:$0xff] %v366
  %369 = vst [vmem:[#allocation2 + $0x8] sm:$0xff] %v367
  // Predicated region
  $region22: #{swiglu_mlp.1} parent=0 // pred_check
    %p370 = pneg %p18
  $region23: #{swiglu_mlp.1} parent=0 // pred_check_branch
    %372 = sbr.rel (%p370) target = $region25
  $region24: #{swiglu_mlp.1} parent=0 // pred_region
    %v373 = vld [vmem:[#allocation2] sm:$0xff]
    %v374 = vld [vmem:[#allocation2 + $0x8] sm:$0xff]
    %375 = vst [vmem:[%s4] sm:$0xff] %v373
    %376 = vst [vmem:[%s4 + $0x8] sm:$0xff] %v374
  $region25: #{swiglu_mlp.1} parent=0 // pred_fallthru
    _
  // Predicated region
  $region26: #{swiglu_mlp.1} parent=0 // pred_check
    _
  $region27: #{swiglu_mlp.1} parent=0 // pred_check_branch
    %378 = sbr.rel (0) target = $region29
  $region28: #{swiglu_mlp.1} parent=0 // pred_region
    _
  $region29: #{swiglu_mlp.1} parent=0 // pred_fallthru
    _
  // Predicated region
  $region30: #{swiglu_mlp.1} parent=0 // pred_check
    _
  $region31: #{swiglu_mlp.1} parent=0 // pred_check_branch
    %380 = sbr.rel (0) target = $region33
  $region32: #{swiglu_mlp.1} parent=0 // pred_region
    _
  $region33: #{swiglu_mlp.1} parent=0 // pred_fallthru
    _

</llo_original>
